<compile_context>
chip_gen: v7x
topology: tpu7x:2x2x1
jax: 0.10.0
libtpu: 0.0.40
codegen_flags: <defaults>
</compile_context>

<pallas_src>
import functools

import jax
import jax.numpy as jnp
from jax import lax
from jax.experimental import pallas as pl
from jax.experimental.pallas import tpu as pltpu


def conv_model_kernel(x_ref, w1f_ref, b1f_ref, wc2_ref, b2_ref, wc3_ref, b3_ref,
                      out_ref, *, kernel_size, dilation, padding, n_outputs):
    x = x_ref[0]                                    # (Cin, L) f32, time on lanes
    cin, L = x.shape
    cout = n_outputs
    k = kernel_size

    # Per-tap causal shifts; padding = (k-1)*dilation so all shifts >= 0, last one is 0.
    shifts = [padding - j * dilation for j in range(k)]

    # Causal masks, pre-broadcast ONCE per (shift, width) (JAX does not CSE
    # broadcast_in_dim), time index on lanes.  Blocks 2 & 3 share mask_mid.
    tpos = lax.broadcasted_iota(jnp.int32, (1, L), 1)
    mask_in = {s: jnp.broadcast_to((tpos >= s).astype(jnp.float32), (cin, L))
               for s in shifts if s > 0}
    mask_mid = {s: jnp.broadcast_to((tpos >= s).astype(jnp.float32), (cout, L))
                for s in shifts if s > 0}

    def taps_of(rh, masks):
        # k causally shifted/masked copies of rh, built in registers and stacked on the
        # sublane (contraction) axis -> (k*C, L).  pltpu.roll is an XLU lane rotation
        # (free slot); no VMEM scratch round-trip, no sub-128 lane-offset stores.
        pieces = []
        for s in shifts:
            if s == 0:
                pieces.append(rh)
            else:
                pieces.append(pltpu.roll(rh, shift=s, axis=1) * masks[s])
        return jnp.concatenate(pieces, axis=0)

    # ---- Block 1 + 1x1 ConvNSNP1D branch, fused into one MXU matmul ----
    # w1f rows [0:Cout]      : DilatedConvNSNP #1 weights, columns = (tap j, chan ci)
    # w1f rows [Cout:2*Cout] : 1x1-branch W0, living only in the shift==0 tap slot.
    rx = jnp.maximum(x, 0.0)                        # relu(x), shared by both branches
    fused = jnp.dot(w1f_ref[...], taps_of(rx, mask_in),
                    preferred_element_type=jnp.float32) + b1f_ref[...]
    h = fused[:cout]                                # dilated block 1 output (Cout, L)
    out1 = fused[cout:]                             # ConvNSNP1D branch output (Cout, L)

    # ---- Blocks 2 & 3: ReLU -> weight_norm dilated conv -> Chomp ----
    # TODO(synk): dropout is identity here (eval-mode semantics).
    for wc_ref, b_ref in ((wc2_ref, b2_ref), (wc3_ref, b3_ref)):
        rh = jnp.maximum(h, 0.0)
        h = jnp.dot(wc_ref[...], taps_of(rh, mask_mid),
                    preferred_element_type=jnp.float32) + b_ref[...]

    # ---- Final: relu(out1 + out2); lane-dense store (last dim = L) ----
    out_ref[0] = jnp.maximum(out1 + h, 0.0)


def conv_model_pallas(x_ncl, params, *, kernel_size, dilation, padding):
    """x_ncl: (B, Cin, L) float32 (PyTorch NCL); returns (B, Cout, L) float32."""
    B, Cin, L = x_ncl.shape
    Cout = params["wc2"].shape[0]
    k = kernel_size

    kernel = functools.partial(conv_model_kernel, kernel_size=k, dilation=dilation,
                               padding=padding, n_outputs=Cout)

    def full(shape):
        return pl.BlockSpec(shape, lambda b, n=len(shape): (0,) * n)

    # Grid over batch: one element per step, full L per tile so the roll+mask causality
    # needs no halo; "parallel" shards batch across v7x's 2 TensorCores and enables
    # double-buffered input/output pipelining.
    # TODO(synk): at production sizes, group several batch elements per step (amortize
    # the ~0.35us/step overhead) and, for very long L, tile L with an n_blocks*padding
    # input halo; size tiles against v7x's 64 MiB VMEM (roughly half a v6e tile).
    grid_spec = pltpu.PrefetchScalarGridSpec(
        num_scalar_prefetch=0,
        grid=(B,),
        in_specs=[
            pl.BlockSpec((1, Cin, L), lambda b: (b, 0, 0)),     # x, one batch element
            full((2 * Cout, k * Cin)), full((2 * Cout, 1)),     # fused block-1 + 1x1 W/b
            full((Cout, k * Cout)), full((Cout, 1)),            # block-2 W/b
            full((Cout, k * Cout)), full((Cout, 1)),            # block-3 W/b
        ],
        out_specs=pl.BlockSpec((1, Cout, L), lambda b: (b, 0, 0)),
    )

    return pl.pallas_call(
        kernel,
        out_shape=jax.ShapeDtypeStruct((B, Cout, L), jnp.float32),
        grid_spec=grid_spec,
        compiler_params=pltpu.CompilerParams(
            dimension_semantics=("parallel",),
        ),
    )(x_ncl, params["w1f"], params["b1f"], params["wc2"], params["b2"],
      params["wc3"], params["b3"])


# ---------------- parameter construction (deterministic, synthetic) ----------------
def make_params(key, n_inputs, n_outputs, kernel_size):
    ks = jax.random.split(key, 8)

    # ConvNSNP1D: Conv1d(n_in, n_out, 1), weight ~ N(0, 0.01)
    w0_t = jax.random.normal(ks[0], (n_outputs, n_inputs, 1), jnp.float32) * 0.01
    b0 = (jax.random.uniform(ks[1], (n_outputs,), jnp.float32, -1.0, 1.0)
          / jnp.sqrt(jnp.float32(n_inputs)))

    def weight_norm_conv(key, cin, cout):
        # weight_norm reparam: w = g * v / ||v||, g initialized to ||v|| -> w == v here.
        v = jax.random.normal(key, (cout, cin, kernel_size), jnp.float32) * 0.01
        norm = jnp.sqrt(jnp.sum(v * v, axis=(1, 2), keepdims=True))
        return norm * v / norm

    w1_t = weight_norm_conv(ks[2], n_inputs, n_outputs)
    w2_t = weight_norm_conv(ks[3], n_outputs, n_outputs)
    w3_t = weight_norm_conv(ks[4], n_outputs, n_outputs)
    b1 = jax.random.uniform(ks[5], (n_outputs,), jnp.float32, -0.1, 0.1)
    b2 = jax.random.uniform(ks[6], (n_outputs,), jnp.float32, -0.1, 0.1)
    b3 = jax.random.uniform(ks[7], (n_outputs,), jnp.float32, -0.1, 0.1)

    # torch-layout weights (Cout, Cin, K) for the reference.
    params_torch = dict(w0=w0_t, b0=b0, w1=w1_t, b1=b1, w2=w2_t, b2=b2, w3=w3_t, b3=b3)

    def tap_matrix(w_t, cin):
        # (Cout, Cin, K) -> (Cout, K, Cin) -> (Cout, K*Cin); column j*Cin+ci == tap j, chan ci.
        return jnp.transpose(w_t, (0, 2, 1)).reshape(n_outputs, kernel_size * cin)

    # Fused block-1 weight: top Cout rows = dilated conv-1 weights; bottom Cout rows =
    # 1x1 branch W0 placed in the shift==0 tap slot (tap index k-1); biases concatenated.
    w0_in_taps = jnp.concatenate(
        [jnp.zeros((n_outputs, (kernel_size - 1) * n_inputs), jnp.float32), w0_t[:, :, 0]],
        axis=1)
    w1f = jnp.concatenate([tap_matrix(w1_t, n_inputs), w0_in_taps], axis=0)
    b1f = jnp.concatenate([b1, b0], axis=0)[:, None]

    params_kernel = dict(
        w1f=w1f, b1f=b1f,                              # (2*Cout, K*Cin), (2*Cout, 1)
        wc2=tap_matrix(w2_t, n_outputs), b2=b2[:, None],
        wc3=tap_matrix(w3_t, n_outputs), b3=b3[:, None],
    )
    return params_torch, params_kernel


# ---------------- pure-JAX reference (PyTorch NCL semantics) ----------------
def reference_forward(x_ncl, p, *, dilation, padding):
    dn = ("NCH", "OIH", "NCH")

    def conv1d(h, w, b, pad, dil):
        y = lax.conv_general_dilated(h, w, window_strides=(1,), padding=[(pad, pad)],
                                     rhs_dilation=(dil,), dimension_numbers=dn)
        return y + b[None, :, None]

    L = x_ncl.shape[2]
    out1 = conv1d(jnp.maximum(x_ncl, 0.0), p["w0"], p["b0"], 0, 1)

    def block(h, w, b):
        y = conv1d(jnp.maximum(h, 0.0), w, b, padding, dilation)
        return y[:, :, :L]  # Chomp1d

    h = block(x_ncl, p["w1"], p["b1"])
    h = block(h, p["w2"], p["b2"])
    h = block(h, p["w3"], p["b3"])
    return jnp.maximum(out1 + h, 0.0)


if __name__ == "__main__":
    # Module hyperparameters (small, consistent with the forward pass).
    n_inputs, n_outputs = 8, 16
    kernel_size, stride, dilation = 3, 1, 2
    padding = (kernel_size - 1) * dilation  # 4 -> causal conv after chomp
    B, L = 2, 128                           # L=128 -> lane-dense output stores

    key = jax.random.PRNGKey(0)
    kx, kp = jax.random.split(key)
    x_ncl = jax.random.normal(kx, (B, n_inputs, L), jnp.float32)   # PyTorch NCL input

    params_torch, params_kernel = make_params(kp, n_inputs, n_outputs, kernel_size)

    out_ncl = conv_model_pallas(x_ncl, params_kernel,
                                kernel_size=kernel_size, dilation=dilation, padding=padding)
    out_ncl = jax.block_until_ready(out_ncl)

    ref = reference_forward(x_ncl, params_torch, dilation=dilation, padding=padding)
    assert out_ncl.shape == (B, n_outputs, L)
    assert jnp.allclose(out_ncl, ref, atol=1e-4, rtol=1e-4), float(jnp.max(jnp.abs(out_ncl - ref)))

    print("KERNEL_OK")
</pallas_src>

<mosaic_0001>
module attributes {stable_mosaic.version = 11 : i64} {
  func.func @conv_model_kernel(%arg0: i32, %arg1: memref<1x8x128xf32, #tpu.memory_space<vmem>>, %arg2: memref<32x24xf32, #tpu.memory_space<vmem>>, %arg3: memref<32x1xf32, #tpu.memory_space<vmem>>, %arg4: memref<16x48xf32, #tpu.memory_space<vmem>>, %arg5: memref<16x1xf32, #tpu.memory_space<vmem>>, %arg6: memref<16x48xf32, #tpu.memory_space<vmem>>, %arg7: memref<16x1xf32, #tpu.memory_space<vmem>>, %arg8: memref<1x16x128xf32, #tpu.memory_space<vmem>>) attributes {dimension_semantics = [#tpu.dimension_semantics<parallel>], iteration_bounds = array<i64: 2>, scalar_prefetch = 0 : i64, scratch_operands = 0 : i64, tpu.core_type = #tpu.core_type<tc>, window_params = [{transform_indices = @transform_0, window_bounds = array<i64: 1, 8, 128>}, {pipeline_mode = #tpu.pipeline_mode<synchronous>, transform_indices = @transform_1, window_bounds = array<i64: 32, 24>}, {pipeline_mode = #tpu.pipeline_mode<synchronous>, transform_indices = @transform_2, window_bounds = array<i64: 32, 1>}, {pipeline_mode = #tpu.pipeline_mode<synchronous>, transform_indices = @transform_3, window_bounds = array<i64: 16, 48>}, {pipeline_mode = #tpu.pipeline_mode<synchronous>, transform_indices = @transform_4, window_bounds = array<i64: 16, 1>}, {pipeline_mode = #tpu.pipeline_mode<synchronous>, transform_indices = @transform_5, window_bounds = array<i64: 16, 48>}, {pipeline_mode = #tpu.pipeline_mode<synchronous>, transform_indices = @transform_6, window_bounds = array<i64: 16, 1>}, {transform_indices = @transform_7, window_bounds = array<i64: 1, 16, 128>}]} {
    %c0 = arith.constant 0 : index
    %c0_0 = arith.constant 0 : index
    %c0_1 = arith.constant 0 : index
    %0 = vector.load %arg1[%c0, %c0_0, %c0_1] : memref<1x8x128xf32, #tpu.memory_space<vmem>>, vector<1x8x128xf32>
    %1 = vector.shape_cast %0 : vector<1x8x128xf32> to vector<8x128xf32>
    %2 = tpu.iota {dimensions = array<i32: 1>} : vector<1x128xi32>
    %c4_i32 = arith.constant 4 : i32
    %3 = vector.broadcast %c4_i32 : i32 to vector<1x128xi32>
    %4 = arith.cmpi sge, %2, %3 : vector<1x128xi32>
    %5 = arith.extui %4 : vector<1x128xi1> to vector<1x128xi32>
    %6 = arith.sitofp %5 : vector<1x128xi32> to vector<1x128xf32>
    %7 = vector.shape_cast %6 : vector<1x128xf32> to vector<1x128xf32>
    %8 = vector.broadcast %7 : vector<1x128xf32> to vector<8x128xf32>
    %c2_i32 = arith.constant 2 : i32
    %9 = vector.broadcast %c2_i32 : i32 to vector<1x128xi32>
    %10 = arith.cmpi sge, %2, %9 : vector<1x128xi32>
    %11 = arith.extui %10 : vector<1x128xi1> to vector<1x128xi32>
    %12 = arith.sitofp %11 : vector<1x128xi32> to vector<1x128xf32>
    %13 = vector.shape_cast %12 : vector<1x128xf32> to vector<1x128xf32>
    %14 = vector.broadcast %13 : vector<1x128xf32> to vector<8x128xf32>
    %c4_i32_2 = arith.constant 4 : i32
    %15 = vector.broadcast %c4_i32_2 : i32 to vector<1x128xi32>
    %16 = arith.cmpi sge, %2, %15 : vector<1x128xi32>
    %17 = arith.extui %16 : vector<1x128xi1> to vector<1x128xi32>
    %18 = arith.sitofp %17 : vector<1x128xi32> to vector<1x128xf32>
    %19 = vector.shape_cast %18 : vector<1x128xf32> to vector<1x128xf32>
    %20 = vector.broadcast %19 : vector<1x128xf32> to vector<16x128xf32>
    %c2_i32_3 = arith.constant 2 : i32
    %21 = vector.broadcast %c2_i32_3 : i32 to vector<1x128xi32>
    %22 = arith.cmpi sge, %2, %21 : vector<1x128xi32>
    %23 = arith.extui %22 : vector<1x128xi1> to vector<1x128xi32>
    %24 = arith.sitofp %23 : vector<1x128xi32> to vector<1x128xf32>
    %25 = vector.shape_cast %24 : vector<1x128xf32> to vector<1x128xf32>
    %26 = vector.broadcast %25 : vector<1x128xf32> to vector<16x128xf32>
    %cst = arith.constant 0.000000e+00 : f32
    %27 = vector.broadcast %cst : f32 to vector<8x128xf32>
    %28 = arith.maximumf %1, %27 : vector<8x128xf32>
    %c0_4 = arith.constant 0 : index
    %c0_5 = arith.constant 0 : index
    %29 = vector.load %arg2[%c0_4, %c0_5] : memref<32x24xf32, #tpu.memory_space<vmem>>, vector<32x24xf32>
    %c4_i32_6 = arith.constant 4 : i32
    %30 = tpu.dynamic_rotate %28 by %c4_i32_6 dim 1 : vector<8x128xf32>, i32 -> vector<8x128xf32>
    %31 = arith.mulf %30, %8 : vector<8x128xf32>
    %c2_i32_7 = arith.constant 2 : i32
    %32 = tpu.dynamic_rotate %28 by %c2_i32_7 dim 1 : vector<8x128xf32>, i32 -> vector<8x128xf32>
    %33 = arith.mulf %32, %14 : vector<8x128xf32>
    %34 = tpu.concatenate %31, %33, %28 in 0 : vector<8x128xf32>, vector<8x128xf32>, vector<8x128xf32> -> vector<24x128xf32>
    %cst_8 = arith.constant dense<0.000000e+00> : vector<32x128xf32>
    %35 = tpu.matmul %29, %34, %cst_8 {dimension_numbers = #tpu.dot_dimension_numbers<[1], [0], [0], [1], [0, 0, 1, 1], [], []>} : vector<32x24xf32>, vector<24x128xf32>, vector<32x128xf32> -> vector<32x128xf32>
    %c0_9 = arith.constant 0 : index
    %c0_10 = arith.constant 0 : index
    %36 = vector.load %arg3[%c0_9, %c0_10] : memref<32x1xf32, #tpu.memory_space<vmem>>, vector<32x1xf32>
    %37 = vector.broadcast %36 : vector<32x1xf32> to vector<32x128xf32>
    %38 = arith.addf %35, %37 : vector<32x128xf32>
    %39 = vector.extract_strided_slice %38 {offsets = [0, 0], sizes = [16, 128], strides = [1, 1]} : vector<32x128xf32> to vector<16x128xf32>
    %40 = vector.extract_strided_slice %38 {offsets = [16, 0], sizes = [16, 128], strides = [1, 1]} : vector<32x128xf32> to vector<16x128xf32>
    %cst_11 = arith.constant 0.000000e+00 : f32
    %41 = vector.broadcast %cst_11 : f32 to vector<16x128xf32>
    %42 = arith.maximumf %39, %41 : vector<16x128xf32>
    %c0_12 = arith.constant 0 : index
    %c0_13 = arith.constant 0 : index
    %43 = vector.load %arg4[%c0_12, %c0_13] : memref<16x48xf32, #tpu.memory_space<vmem>>, vector<16x48xf32>
    %c4_i32_14 = arith.constant 4 : i32
    %44 = tpu.dynamic_rotate %42 by %c4_i32_14 dim 1 : vector<16x128xf32>, i32 -> vector<16x128xf32>
    %45 = arith.mulf %44, %20 : vector<16x128xf32>
    %c2_i32_15 = arith.constant 2 : i32
    %46 = tpu.dynamic_rotate %42 by %c2_i32_15 dim 1 : vector<16x128xf32>, i32 -> vector<16x128xf32>
    %47 = arith.mulf %46, %26 : vector<16x128xf32>
    %48 = tpu.concatenate %45, %47, %42 in 0 : vector<16x128xf32>, vector<16x128xf32>, vector<16x128xf32> -> vector<48x128xf32>
    %cst_16 = arith.constant dense<0.000000e+00> : vector<16x128xf32>
    %49 = tpu.matmul %43, %48, %cst_16 {dimension_numbers = #tpu.dot_dimension_numbers<[1], [0], [0], [1], [0, 0, 1, 1], [], []>} : vector<16x48xf32>, vector<48x128xf32>, vector<16x128xf32> -> vector<16x128xf32>
    %c0_17 = arith.constant 0 : index
    %c0_18 = arith.constant 0 : index
    %50 = vector.load %arg5[%c0_17, %c0_18] : memref<16x1xf32, #tpu.memory_space<vmem>>, vector<16x1xf32>
    %51 = vector.broadcast %50 : vector<16x1xf32> to vector<16x128xf32>
    %52 = arith.addf %49, %51 : vector<16x128xf32>
    %cst_19 = arith.constant 0.000000e+00 : f32
    %53 = vector.broadcast %cst_19 : f32 to vector<16x128xf32>
    %54 = arith.maximumf %52, %53 : vector<16x128xf32>
    %c0_20 = arith.constant 0 : index
    %c0_21 = arith.constant 0 : index
    %55 = vector.load %arg6[%c0_20, %c0_21] : memref<16x48xf32, #tpu.memory_space<vmem>>, vector<16x48xf32>
    %c4_i32_22 = arith.constant 4 : i32
    %56 = tpu.dynamic_rotate %54 by %c4_i32_22 dim 1 : vector<16x128xf32>, i32 -> vector<16x128xf32>
    %57 = arith.mulf %56, %20 : vector<16x128xf32>
    %c2_i32_23 = arith.constant 2 : i32
    %58 = tpu.dynamic_rotate %54 by %c2_i32_23 dim 1 : vector<16x128xf32>, i32 -> vector<16x128xf32>
    %59 = arith.mulf %58, %26 : vector<16x128xf32>
    %60 = tpu.concatenate %57, %59, %54 in 0 : vector<16x128xf32>, vector<16x128xf32>, vector<16x128xf32> -> vector<48x128xf32>
    %cst_24 = arith.constant dense<0.000000e+00> : vector<16x128xf32>
    %61 = tpu.matmul %55, %60, %cst_24 {dimension_numbers = #tpu.dot_dimension_numbers<[1], [0], [0], [1], [0, 0, 1, 1], [], []>} : vector<16x48xf32>, vector<48x128xf32>, vector<16x128xf32> -> vector<16x128xf32>
    %c0_25 = arith.constant 0 : index
    %c0_26 = arith.constant 0 : index
    %62 = vector.load %arg7[%c0_25, %c0_26] : memref<16x1xf32, #tpu.memory_space<vmem>>, vector<16x1xf32>
    %63 = vector.broadcast %62 : vector<16x1xf32> to vector<16x128xf32>
    %64 = arith.addf %61, %63 : vector<16x128xf32>
    %65 = arith.addf %40, %64 : vector<16x128xf32>
    %cst_27 = arith.constant 0.000000e+00 : f32
    %66 = vector.broadcast %cst_27 : f32 to vector<16x128xf32>
    %67 = arith.maximumf %65, %66 : vector<16x128xf32>
    %c0_28 = arith.constant 0 : index
    %c0_29 = arith.constant 0 : index
    %c0_30 = arith.constant 0 : index
    %68 = vector.load %arg8[%c0_28, %c0_29, %c0_30] : memref<1x16x128xf32, #tpu.memory_space<vmem>>, vector<1x16x128xf32>
    %69 = vector.shape_cast %68 : vector<1x16x128xf32> to vector<16x128xf32>
    %70 = vector.shape_cast %67 : vector<16x128xf32> to vector<1x16x128xf32>
    tpu.vector_store %arg8[%c0_28, %c0_29, %c0_30], %70 {strides = array<i32>} : memref<1x16x128xf32, #tpu.memory_space<vmem>>, vector<1x16x128xf32>,
    return
  }
  func.func @transform_0(%arg0: i32) -> (i32, i32, i32) {
    %c0_i32 = arith.constant 0 : i32
    %c0_i32_0 = arith.constant 0 : i32
    %c0_i32_1 = arith.constant 0 : i32
    return %arg0, %c0_i32, %c0_i32_0 : i32, i32, i32
  }
  func.func @transform_1(%arg0: i32) -> (i32, i32) {
    %c0_i32 = arith.constant 0 : i32
    %c0_i32_0 = arith.constant 0 : i32
    %c0_i32_1 = arith.constant 0 : i32
    return %c0_i32, %c0_i32_0 : i32, i32
  }
  func.func @transform_2(%arg0: i32) -> (i32, i32) {
    %c0_i32 = arith.constant 0 : i32
    %c0_i32_0 = arith.constant 0 : i32
    %c0_i32_1 = arith.constant 0 : i32
    return %c0_i32, %c0_i32_0 : i32, i32
  }
  func.func @transform_3(%arg0: i32) -> (i32, i32) {
    %c0_i32 = arith.constant 0 : i32
    %c0_i32_0 = arith.constant 0 : i32
    %c0_i32_1 = arith.constant 0 : i32
    return %c0_i32, %c0_i32_0 : i32, i32
  }
  func.func @transform_4(%arg0: i32) -> (i32, i32) {
    %c0_i32 = arith.constant 0 : i32
    %c0_i32_0 = arith.constant 0 : i32
    %c0_i32_1 = arith.constant 0 : i32
    return %c0_i32, %c0_i32_0 : i32, i32
  }
  func.func @transform_5(%arg0: i32) -> (i32, i32) {
    %c0_i32 = arith.constant 0 : i32
    %c0_i32_0 = arith.constant 0 : i32
    %c0_i32_1 = arith.constant 0 : i32
    return %c0_i32, %c0_i32_0 : i32, i32
  }
  func.func @transform_6(%arg0: i32) -> (i32, i32) {
    %c0_i32 = arith.constant 0 : i32
    %c0_i32_0 = arith.constant 0 : i32
    %c0_i32_1 = arith.constant 0 : i32
    return %c0_i32, %c0_i32_0 : i32, i32
  }
  func.func @transform_7(%arg0: i32) -> (i32, i32, i32) {
    %c0_i32 = arith.constant 0 : i32
    %c0_i32_0 = arith.constant 0 : i32
    %c0_i32_1 = arith.constant 0 : i32
    return %arg0, %c0_i32, %c0_i32_0 : i32, i32, i32
  }
}

</mosaic_0001>

<llo_original>
// kernel: tpu_custom_call.1
$region0: #{tpu_custom_call.1}
  #allocation0 [shape = 'u32[]', space=smem, size = 0x4, offset = 0x4, fixed_abs, tag = 'smem constant byte address 0x4 - core index']
  #allocation1 [shape = 'u32[144,128]{1,0:T(1,128)}', space=vmem, size = 0x12000, scoped, tag = 'internal scratch']
  %s0 = inlined_call_operand.vmem [shape: f32[2,8,128], index: 0, kind: input, shape index: {}]
  %s1 = inlined_call_operand.vmem [shape: f32[32,24], index: 1, kind: input, shape index: {}]
  %s2 = inlined_call_operand.vmem [shape: f32[32,1], index: 2, kind: input, shape index: {}]
  %s3 = inlined_call_operand.vmem [shape: f32[16,48], index: 3, kind: input, shape index: {}]
  %s4 = inlined_call_operand.vmem [shape: f32[16,1], index: 4, kind: input, shape index: {}]
  %s5 = inlined_call_operand.vmem [shape: f32[16,48], index: 5, kind: input, shape index: {}]
  %s6 = inlined_call_operand.vmem [shape: f32[16,1], index: 6, kind: input, shape index: {}]
  %s7 = inlined_call_operand.hbm [shape: f32[2,16,128], index: 7, kind: output, shape index: {}]
  %s8 = sld [smem:[#allocation0]]
  $region61: #{tpu_custom_call.1} parent=0
    _
  %s10 = ssub.s32 1, %s8
  %s11 = scalar_select 0, %s10, %s8
  $region1: #{tpu_custom_call.1} parent=0
    #allocation2 [shape = 'u8[16384]{0}', space=vmem, size = 0x4000, scoped, tag = 'output window, operand 0']
    #allocation3 [shape = 's32[2]{0}', space=sflag, size = 0x8, scoped, tag = 'scoped memory for tpu_custom_call.1']
    %12 = vsyncpa [#allocation3], 0
    %s13 = scalar_lea.sflag [#allocation3], 1
    %14 = vsyncpa %s13, 0
    loop: start=0, step=1, limit=4
    $region2: #{tpu_custom_call.1} parent=1 // loop_pre_header
      _
    $region3: #{tpu_custom_call.1} parent=1 // loop_header
      %s16 = sphi 0, %s20
      %p17 = scmp.ge.s32.totalorder %s16, 4
      %s26 = sphi 0, %s28
      %s29 = sphi 0, %s26
      %s30 = sphi 0, %s29
      %s46 = sphi 0, %s30
      %s50 = sphi 0, %s50
      %s52 = sphi 0, %s50
      %s53 = sphi 0, %s52
      %s67 = sphi 0, %s53
      %s71 = sphi 0, %s71
      %s73 = sphi 0, %s71
      %s74 = sphi 0, %s73
      %s88 = sphi 0, %s74
      %s92 = sphi 0, %s92
      %s94 = sphi 0, %s92
      %s95 = sphi 0, %s94
      %s109 = sphi 0, %s95
      %s113 = sphi 0, %s113
      %s115 = sphi 0, %s113
      %s116 = sphi 0, %s115
      %s130 = sphi 0, %s116
      %s134 = sphi 0, %s134
      %s136 = sphi 0, %s134
      %s137 = sphi 0, %s136
      %s151 = sphi 0, %s137
      %s155 = sphi 0, %s155
      %s157 = sphi 0, %s155
      %s158 = sphi 0, %s157
      %s172 = sphi 0, %s158
      %s178 = sphi 0, %s180
      %s181 = sphi 0, %s178
      %s182 = sphi 0, %s181
      %s198 = sphi 0, %s182
    $region4: #{tpu_custom_call.1} parent=1 // loop_header_branch
      %19 = sbr.rel (%p17) target = $region8
    $region5: #{tpu_custom_call.1} parent=1 // loop_body
      %s21 = ssub.s32 %s16, 1
      %s22 = ssub.s32 %s16, 2
      %s23 = sadd.s32 %s16, 1
      %s24 = ssub.s32 %s16, %s23
      %p25 = scmp.eq.s32.totalorder %s24, 0
      %s27 = sadd.s32 %s26, 1
      %s28 = scalar_select %p25, %s26, %s27
      %p31 = pneg %p25
      %p32 = scmp.eq.s32.totalorder %s16, 1
      %p33 = por %p31, %p32
      %p34 = scmp.ne.s32.totalorder %s26, %s29
      %p35 = scmp.eq.s32.totalorder %s16, 0
      %p36 = por %p34, %p35
      %p37 = scmp.ne.s32.totalorder %s26, %s29
      %p38 = scmp.eq.s32.totalorder %s21, 1
      %p39 = por %p37, %p38
      %p40 = scmp.ne.s32.totalorder %s29, %s30
      %p41 = scmp.eq.s32.totalorder %s21, 0
      %p42 = por %p40, %p41
      %p43 = scmp.ne.s32.totalorder %s29, %s30
      %p44 = scmp.eq.s32.totalorder %s22, 1
      %p45 = por %p43, %p44
      %p47 = scmp.ne.s32.totalorder %s30, %s46
      %p48 = scmp.eq.s32.totalorder %s22, 0
      %p49 = por %p47, %p48
      %s51 = sadd.s32 %s50, 1
      %p54 = scmp.eq.s32.totalorder %s16, 1
      %p55 = scmp.ne.s32.totalorder %s50, %s52
      %p56 = scmp.eq.s32.totalorder %s16, 0
      %p57 = por %p55, %p56
      %p58 = scmp.ne.s32.totalorder %s50, %s52
      %p59 = scmp.eq.s32.totalorder %s21, 1
      %p60 = por %p58, %p59
      %p61 = scmp.ne.s32.totalorder %s52, %s53
      %p62 = scmp.eq.s32.totalorder %s21, 0
      %p63 = por %p61, %p62
      %p64 = scmp.ne.s32.totalorder %s52, %s53
      %p65 = scmp.eq.s32.totalorder %s22, 1
      %p66 = por %p64, %p65
      %p68 = scmp.ne.s32.totalorder %s53, %s67
      %p69 = scmp.eq.s32.totalorder %s22, 0
      %p70 = por %p68, %p69
      %s72 = sadd.s32 %s71, 1
      %p75 = scmp.eq.s32.totalorder %s16, 1
      %p76 = scmp.ne.s32.totalorder %s71, %s73
      %p77 = scmp.eq.s32.totalorder %s16, 0
      %p78 = por %p76, %p77
      %p79 = scmp.ne.s32.totalorder %s71, %s73
      %p80 = scmp.eq.s32.totalorder %s21, 1
      %p81 = por %p79, %p80
      %p82 = scmp.ne.s32.totalorder %s73, %s74
      %p83 = scmp.eq.s32.totalorder %s21, 0
      %p84 = por %p82, %p83
      %p85 = scmp.ne.s32.totalorder %s73, %s74
      %p86 = scmp.eq.s32.totalorder %s22, 1
      %p87 = por %p85, %p86
      %p89 = scmp.ne.s32.totalorder %s74, %s88
      %p90 = scmp.eq.s32.totalorder %s22, 0
      %p91 = por %p89, %p90
      %s93 = sadd.s32 %s92, 1
      %p96 = scmp.eq.s32.totalorder %s16, 1
      %p97 = scmp.ne.s32.totalorder %s92, %s94
      %p98 = scmp.eq.s32.totalorder %s16, 0
      %p99 = por %p97, %p98
      %p100 = scmp.ne.s32.totalorder %s92, %s94
      %p101 = scmp.eq.s32.totalorder %s21, 1
      %p102 = por %p100, %p101
      %p103 = scmp.ne.s32.totalorder %s94, %s95
      %p104 = scmp.eq.s32.totalorder %s21, 0
      %p105 = por %p103, %p104
      %p106 = scmp.ne.s32.totalorder %s94, %s95
      %p107 = scmp.eq.s32.totalorder %s22, 1
      %p108 = por %p106, %p107
      %p110 = scmp.ne.s32.totalorder %s95, %s109
      %p111 = scmp.eq.s32.totalorder %s22, 0
      %p112 = por %p110, %p111
      %s114 = sadd.s32 %s113, 1
      %p117 = scmp.eq.s32.totalorder %s16, 1
      %p118 = scmp.ne.s32.totalorder %s113, %s115
      %p119 = scmp.eq.s32.totalorder %s16, 0
      %p120 = por %p118, %p119
      %p121 = scmp.ne.s32.totalorder %s113, %s115
      %p122 = scmp.eq.s32.totalorder %s21, 1
      %p123 = por %p121, %p122
      %p124 = scmp.ne.s32.totalorder %s115, %s116
      %p125 = scmp.eq.s32.totalorder %s21, 0
      %p126 = por %p124, %p125
      %p127 = scmp.ne.s32.totalorder %s115, %s116
      %p128 = scmp.eq.s32.totalorder %s22, 1
      %p129 = por %p127, %p128
      %p131 = scmp.ne.s32.totalorder %s116, %s130
      %p132 = scmp.eq.s32.totalorder %s22, 0
      %p133 = por %p131, %p132
      %s135 = sadd.s32 %s134, 1
      %p138 = scmp.eq.s32.totalorder %s16, 1
      %p139 = scmp.ne.s32.totalorder %s134, %s136
      %p140 = scmp.eq.s32.totalorder %s16, 0
      %p141 = por %p139, %p140
      %p142 = scmp.ne.s32.totalorder %s134, %s136
      %p143 = scmp.eq.s32.totalorder %s21, 1
      %p144 = por %p142, %p143
      %p145 = scmp.ne.s32.totalorder %s136, %s137
      %p146 = scmp.eq.s32.totalorder %s21, 0
      %p147 = por %p145, %p146
      %p148 = scmp.ne.s32.totalorder %s136, %s137
      %p149 = scmp.eq.s32.totalorder %s22, 1
      %p150 = por %p148, %p149
      %p152 = scmp.ne.s32.totalorder %s137, %s151
      %p153 = scmp.eq.s32.totalorder %s22, 0
      %p154 = por %p152, %p153
      %s156 = sadd.s32 %s155, 1
      %p159 = scmp.eq.s32.totalorder %s16, 1
      %p160 = scmp.ne.s32.totalorder %s155, %s157
      %p161 = scmp.eq.s32.totalorder %s16, 0
      %p162 = por %p160, %p161
      %p163 = scmp.ne.s32.totalorder %s155, %s157
      %p164 = scmp.eq.s32.totalorder %s21, 1
      %p165 = por %p163, %p164
      %p166 = scmp.ne.s32.totalorder %s157, %s158
      %p167 = scmp.eq.s32.totalorder %s21, 0
      %p168 = por %p166, %p167
      %p169 = scmp.ne.s32.totalorder %s157, %s158
      %p170 = scmp.eq.s32.totalorder %s22, 1
      %p171 = por %p169, %p170
      %p173 = scmp.ne.s32.totalorder %s158, %s172
      %p174 = scmp.eq.s32.totalorder %s22, 0
      %p175 = por %p173, %p174
      %s176 = ssub.s32 %s16, %s23
      %p177 = scmp.eq.s32.totalorder %s176, 0
      %s179 = sadd.s32 %s178, 1
      %s180 = scalar_select %p177, %s178, %s179
      %p183 = pneg %p177
      %p184 = scmp.eq.s32.totalorder %s16, 1
      %p185 = por %p183, %p184
      %p186 = scmp.ne.s32.totalorder %s178, %s181
      %p187 = scmp.eq.s32.totalorder %s16, 0
      %p188 = por %p186, %p187
      %p189 = scmp.ne.s32.totalorder %s178, %s181
      %p190 = scmp.eq.s32.totalorder %s21, 1
      %p191 = por %p189, %p190
      %p192 = scmp.ne.s32.totalorder %s181, %s182
      %p193 = scmp.eq.s32.totalorder %s21, 0
      %p194 = por %p192, %p193
      %p195 = scmp.ne.s32.totalorder %s181, %s182
      %p196 = scmp.eq.s32.totalorder %s22, 1
      %p197 = por %p195, %p196
      %p199 = scmp.ne.s32.totalorder %s182, %s198
      %p200 = scmp.eq.s32.totalorder %s22, 0
      %p201 = por %p199, %p200
      %p202 = scmp.le.s32.totalorder 1, %s16
      %p203 = scmp.lt.s32.totalorder %s16, 3
      %p204 = pnand %p202, %p203
      %p205 = pneg %p204
      // Predicated region
      $region9: #{tpu_custom_call.1} parent=5 // pred_check
        _
      $region10: #{tpu_custom_call.1} parent=5 // pred_check_branch
        %207 = sbr.rel (%p204) target = $region12
      $region11: #{tpu_custom_call.1} parent=5 // pred_region
        %s208 = ssub.s32 %s16, 1
        // Predicated region
        $region13: #{tpu_custom_call.1} parent=11 // pred_check
          %p209 = pneg %p63
        $region14: #{tpu_custom_call.1} parent=11 // pred_check_branch
          %211 = sbr.rel (%p209) target = $region16
        $region15: #{tpu_custom_call.1} parent=11 // pred_region
          _
        $region16: #{tpu_custom_call.1} parent=11 // pred_fallthru
          _
        // Predicated region
        $region17: #{tpu_custom_call.1} parent=11 // pred_check
          %p212 = pneg %p84
        $region18: #{tpu_custom_call.1} parent=11 // pred_check_branch
          %214 = sbr.rel (%p212) target = $region20
        $region19: #{tpu_custom_call.1} parent=11 // pred_region
          _
        $region20: #{tpu_custom_call.1} parent=11 // pred_fallthru
          _
        // Predicated region
        $region21: #{tpu_custom_call.1} parent=11 // pred_check
          %p215 = pneg %p105
        $region22: #{tpu_custom_call.1} parent=11 // pred_check_branch
          %217 = sbr.rel (%p215) target = $region24
        $region23: #{tpu_custom_call.1} parent=11 // pred_region
          _
        $region24: #{tpu_custom_call.1} parent=11 // pred_fallthru
          _
        // Predicated region
        $region25: #{tpu_custom_call.1} parent=11 // pred_check
          %p218 = pneg %p126
        $region26: #{tpu_custom_call.1} parent=11 // pred_check_branch
          %220 = sbr.rel (%p218) target = $region28
        $region27: #{tpu_custom_call.1} parent=11 // pred_region
          _
        $region28: #{tpu_custom_call.1} parent=11 // pred_fallthru
          _
        // Predicated region
        $region29: #{tpu_custom_call.1} parent=11 // pred_check
          %p221 = pneg %p147
        $region30: #{tpu_custom_call.1} parent=11 // pred_check_branch
          %223 = sbr.rel (%p221) target = $region32
        $region31: #{tpu_custom_call.1} parent=11 // pred_region
          _
        $region32: #{tpu_custom_call.1} parent=11 // pred_fallthru
          _
        // Predicated region
        $region33: #{tpu_custom_call.1} parent=11 // pred_check
          %p224 = pneg %p168
        $region34: #{tpu_custom_call.1} parent=11 // pred_check_branch
          %226 = sbr.rel (%p224) target = $region36
        $region35: #{tpu_custom_call.1} parent=11 // pred_region
          _
        $region36: #{tpu_custom_call.1} parent=11 // pred_fallthru
          _
      $region12: #{tpu_custom_call.1} parent=5 // pred_fallthru
        _
      %p227 = scmp.lt.s32.totalorder %s16, 2
      // Predicated region
      $region37: #{tpu_custom_call.1} parent=5 // pred_check
        %p228 = pneg %p227
      $region38: #{tpu_custom_call.1} parent=5 // pred_check_branch
        %230 = sbr.rel (%p228) target = $region40
      $region39: #{tpu_custom_call.1} parent=5 // pred_region
        // Predicated region
        $region41: #{tpu_custom_call.1} parent=39 // pred_check
          %p231 = pneg %p36
        $region42: #{tpu_custom_call.1} parent=39 // pred_check_branch
          %233 = sbr.rel (%p231) target = $region44
        $region43: #{tpu_custom_call.1} parent=39 // pred_region
          %p234 = scmp.lt.s32.totalorder %s16, 1
          %s235 = scalar_select %p234, %s16, 1
          %s236 = smul.addr %s235, 8
          %s237 = scalar_lea.vmem %s0, %s236
        $region44: #{tpu_custom_call.1} parent=39 // pred_fallthru
          _
      $region40: #{tpu_custom_call.1} parent=5 // pred_fallthru
        _
      %p238 = scmp.le.s32.totalorder 1, %s16
      %p239 = scmp.lt.s32.totalorder %s16, 3
      %p240 = pnand %p238, %p239
      %p241 = pneg %p240
      // Predicated region
      $region45: #{tpu_custom_call.1} parent=5 // pred_check
        _
      $region46: #{tpu_custom_call.1} parent=5 // pred_check_branch
        %243 = sbr.rel (%p240) target = $region48
      $region47: #{tpu_custom_call.1} parent=5 // pred_region
        %s244 = ssub.s32 %s16, 1
        %p245 = scmp.lt.s32.totalorder %s21, 1
        %s246 = scalar_select %p245, %s21, 1
        %s247 = smul.addr %s246, 8
        %s248 = scalar_lea.vmem %s0, %s247
        %p249 = pneg %p42
        %p250 = pneg %p39
        %p251 = pneg %p63
        %p252 = pneg %p60
        %p253 = pneg %p84
        %p254 = pneg %p81
        %p255 = pneg %p105
        %p256 = pneg %p102
        %p257 = pneg %p126
        %p258 = pneg %p123
        %p259 = pneg %p147
        %p260 = pneg %p144
        %p261 = pneg %p168
        %p262 = pneg %p165
        %p263 = pneg %p194
        %p264 = pneg %p191
        %s265 = sand.u32 %s181, 1
        %s266 = scalar_lea.sflag [#allocation3], %s265
        %s267 = sand.u32 %s181, 1
        %s268 = smul.addr %s267, 16
        %s269 = scalar_lea.vmem [#allocation2], %s268
        %p270 = scmp.lt.s32.totalorder %s21, 1
        %s271 = scalar_select %p270, %s21, 1
        %s272 = smul.addr %s271, 8
        %s273 = scalar_lea.vmem %s0, %s272
        %v274 = vld [vmem:[%s273] sm:$0xff]
        %v275 = vlaneseq
        %v276 = vand.u32 %v275, 127
        %vm277 = vcmp.ge.s32.totalorder %v276, 4
        %v278 = vsel %vm277, 1, 0
        %v279 = vcvt.s32.f32 %v278
        %vm280 = vcmp.ge.s32.totalorder %v276, 2
        %v281 = vsel %vm280, 1, 0
        %v282 = vcvt.s32.f32 %v281
        %v283 = vmax.f32 %v274, 0.0
        %v284 = vld [vmem:[%s1] sm:$0xff]
        %v285 = vld [vmem:[%s1 + $0x8] sm:$0xff]
        %v286 = vld [vmem:[%s1 + $0x10] sm:$0xff]
        %v287 = vld [vmem:[%s1 + $0x18] sm:$0xff]
        %288 = vrot.lane.b32.xlu0 %v283, 4
        %v289 = vpop.permute.xlu0 %288
        %v290 = vmul.f32 %v289, %v279
        %291 = vrot.lane.b32.xlu0 %v283, 2
        %v292 = vpop.permute.xlu0 %291
        %v293 = vmul.f32 %v292, %v282
        %v294 = vld [vmem:[%s2] sm:$0xff]
        %v295 = vld [vmem:[%s2 + $0x8] sm:$0xff]
        %v296 = vld [vmem:[%s2 + $0x10] sm:$0xff]
        %v297 = vld [vmem:[%s2 + $0x18] sm:$0xff]
        %299 = vset.pattern.permute.xlu0 0
        %300 = vperm.xlu0 %299, %v294
        %v301 = vpop.permute.xlu0 %300
        %304 = vset.pattern.permute.xlu0 0
        %305 = vperm.xlu0 %304, %v295
        %v306 = vpop.permute.xlu0 %305
        %309 = vset.pattern.permute.xlu0 0
        %310 = vperm.xlu0 %309, %v296
        %v311 = vpop.permute.xlu0 %310
        %314 = vset.pattern.permute.xlu0 0
        %315 = vperm.xlu0 %314, %v297
        %v316 = vpop.permute.xlu0 %315
        %vm318 = vcmask 195584
        %v320 = vsel %vm318, %v284, 0
        %v323 = vsel %vm318, %v285, 0
        %v326 = vsel %vm318, %v286, 0
        %v329 = vsel %vm318, %v287, 0
        %331 = vmatprep.subr.mxu0 0.0
        %332 = vmatpush1.msra.mxu0 %v290
        %333 = vmatprep.subr.mxu0 0.0
        %334 = vmatpush1.msra.mxu0 %v293
        %335 = vmatprep.subr.mxu0 0.0
        %336 = vmatpush1.msra.mxu0 %v283
        %337 = vmatprep.subr.mxu0 0.0
        %338 = vmatpush1.msra.mxu0 0.0
        %339 = vmatprep.subr.mxu0 0.0
        %340 = vmatpush1.msra.mxu0 0.0
        %341 = vmatprep.subr.mxu0 0.0
        %342 = vmatpush1.msra.mxu0 0.0
        %343 = vmatprep.subr.mxu0 0.0
        %344 = vmatpush1.msra.mxu0 0.0
        %345 = vmatprep.subr.mxu0 0.0
        %346 = vmatpush1.msra.mxu0 0.0
        %347 = vmatprep.subr.mxu0 0.0
        %348 = vmatpush1.msra.mxu0 0.0
        %349 = vmatprep.subr.mxu0 0.0
        %350 = vmatpush1.msra.mxu0 0.0
        %351 = vmatprep.subr.mxu0 0.0
        %352 = vmatpush1.msra.mxu0 0.0
        %353 = vmatprep.subr.mxu0 0.0
        %354 = vmatpush1.msra.mxu0 0.0
        %355 = vmatprep.subr.mxu0 0.0
        %356 = vmatpush1.msra.mxu0 0.0
        %357 = vmatprep.subr.mxu0 0.0
        %358 = vmatpush1.msra.mxu0 0.0
        %359 = vmatprep.subr.mxu0 0.0
        %360 = vmatpush1.msra.mxu0 0.0
        %361 = vmatprep.subr.mxu0 0.0
        %362 = vmatpush1.msra.mxu0 0.0
        %363 = vmatprep.subr.mxu0 0.0
        %364 = vmatpush1.msra.mxu0 0.0
        %365 = vmatprep.subr.mxu0 0.0
        %366 = vmatpush1.msra.mxu0 0.0
        %367 = vmatprep.subr.mxu0 0.0
        %368 = vmatpush1.msra.mxu0 0.0
        %369 = vmatprep.subr.mxu0 0.0
        %370 = vmatpush1.msra.mxu0 0.0
        %371 = vmatprep.subr.mxu0 0.0
        %372 = vmatpush1.msra.mxu0 0.0
        %373 = vmatprep.subr.mxu0 0.0
        %374 = vmatpush1.msra.mxu0 0.0
        %375 = vmatprep.subr.mxu0 0.0
        %376 = vmatpush1.msra.mxu0 0.0
        %377 = vmatprep.subr.mxu0 0.0
        %378 = vmatpush1.msra.mxu0 0.0
        %379 = vmatprep.subr.mxu0 0.0
        %380 = vmatpush1.msra.mxu0 0.0
        %381 = vmatprep.subr.mxu0 0.0
        %382 = vmatpush1.msra.mxu0 0.0
        %383 = vmatprep.subr.mxu0 0.0
        %384 = vmatpush1.msra.mxu0 0.0
        %385 = vmatprep.subr.mxu0 0.0
        %386 = vmatpush1.msra.mxu0 0.0
        %387 = vmatprep.subr.mxu0 0.0
        %388 = vmatpush1.msra.mxu0 0.0
        %389 = vmatprep.subr.mxu0 0.0
        %390 = vmatpush1.msra.mxu0 0.0
        %391 = vmatprep.subr.mxu0 0.0
        %392 = vmatpush1.msra.mxu0 0.0
        %393 = vmatprep.subr.mxu0 0.0
        %394 = vmatpush1.msra.mxu0 0.0
        %395 = vmatprep.mubr.f32.mxu0 0.0
        %396 = vmatmul.mubr.f32.gmra.mrb[0].mxu0 %v320
        %v397 = vpop.f32.mrb[0].mxu0
        %v398 = vadd.f32 %v301, %v397
        %v399 = vpop.f32.mrb[0].mxu0
        %400 = vmatprep.mubr.f32.mxu0 0.0
        %401 = vmatmul.mubr.f32.gmra.mrb[0].mxu0 %v323
        %v402 = vpop.f32.mrb[0].mxu0
        %v403 = vadd.f32 %v306, %v402
        %v404 = vpop.f32.mrb[0].mxu0
        %405 = vmatprep.mubr.f32.mxu0 0.0
        %406 = vmatmul.mubr.f32.gmra.mrb[0].mxu0 %v326
        %v407 = vpop.f32.mrb[0].mxu0
        %v408 = vadd.f32 %v311, %v407
        %v409 = vpop.f32.mrb[0].mxu0
        %410 = vmatprep.mubr.f32.mxu0 0.0
        %411 = vmatmul.mubr.f32.gmra.mrb[0].mxu0 %v329
        %v412 = vpop.f32.mrb[0].mxu0
        %v413 = vadd.f32 %v316, %v412
        %v414 = vpop.f32.mrb[0].mxu0
        %415 = vdwg.mxu0
        %v416 = vmax.f32 %v398, 0.0
        %v417 = vmax.f32 %v403, 0.0
        %v418 = vld [vmem:[%s3] sm:$0xff]
        %v419 = vld [vmem:[%s3 + $0x8] sm:$0xff]
        %420 = vrot.lane.b32.xlu0 %v416, 4
        %v421 = vpop.permute.xlu0 %420
        %422 = vrot.lane.b32.xlu0 %v417, 4
        %v423 = vpop.permute.xlu0 %422
        %v424 = vmul.f32 %v421, %v279
        %v425 = vmul.f32 %v423, %v279
        %426 = vrot.lane.b32.xlu0 %v416, 2
        %v427 = vpop.permute.xlu0 %426
        %428 = vrot.lane.b32.xlu0 %v417, 2
        %v429 = vpop.permute.xlu0 %428
        %v430 = vmul.f32 %v427, %v282
        %v431 = vmul.f32 %v429, %v282
        %v432 = vld [vmem:[%s4] sm:$0xff]
        %v433 = vld [vmem:[%s4 + $0x8] sm:$0xff]
        %435 = vset.pattern.permute.xlu0 0
        %436 = vperm.xlu0 %435, %v432
        %v437 = vpop.permute.xlu0 %436
        %440 = vset.pattern.permute.xlu0 0
        %441 = vperm.xlu0 %440, %v433
        %v442 = vpop.permute.xlu0 %441
        %vm444 = vcmask 392192
        %v446 = vsel %vm444, %v418, 0
        %v449 = vsel %vm444, %v419, 0
        %451 = vmatprep.subr.mxu0 0.0
        %452 = vmatpush1.msra.mxu0 %v424
        %453 = vmatprep.subr.mxu0 0.0
        %454 = vmatpush1.msra.mxu0 %v425
        %455 = vmatprep.subr.mxu0 0.0
        %456 = vmatpush1.msra.mxu0 %v430
        %457 = vmatprep.subr.mxu0 0.0
        %458 = vmatpush1.msra.mxu0 %v431
        %459 = vmatprep.subr.mxu0 0.0
        %460 = vmatpush1.msra.mxu0 %v416
        %461 = vmatprep.subr.mxu0 0.0
        %462 = vmatpush1.msra.mxu0 %v417
        %463 = vmatprep.subr.mxu0 0.0
        %464 = vmatpush1.msra.mxu0 0.0
        %465 = vmatprep.subr.mxu0 0.0
        %466 = vmatpush1.msra.mxu0 0.0
        %467 = vmatprep.subr.mxu0 0.0
        %468 = vmatpush1.msra.mxu0 0.0
        %469 = vmatprep.subr.mxu0 0.0
        %470 = vmatpush1.msra.mxu0 0.0
        %471 = vmatprep.subr.mxu0 0.0
        %472 = vmatpush1.msra.mxu0 0.0
        %473 = vmatprep.subr.mxu0 0.0
        %474 = vmatpush1.msra.mxu0 0.0
        %475 = vmatprep.subr.mxu0 0.0
        %476 = vmatpush1.msra.mxu0 0.0
        %477 = vmatprep.subr.mxu0 0.0
        %478 = vmatpush1.msra.mxu0 0.0
        %479 = vmatprep.subr.mxu0 0.0
        %480 = vmatpush1.msra.mxu0 0.0
        %481 = vmatprep.subr.mxu0 0.0
        %482 = vmatpush1.msra.mxu0 0.0
        %483 = vmatprep.subr.mxu0 0.0
        %484 = vmatpush1.msra.mxu0 0.0
        %485 = vmatprep.subr.mxu0 0.0
        %486 = vmatpush1.msra.mxu0 0.0
        %487 = vmatprep.subr.mxu0 0.0
        %488 = vmatpush1.msra.mxu0 0.0
        %489 = vmatprep.subr.mxu0 0.0
        %490 = vmatpush1.msra.mxu0 0.0
        %491 = vmatprep.subr.mxu0 0.0
        %492 = vmatpush1.msra.mxu0 0.0
        %493 = vmatprep.subr.mxu0 0.0
        %494 = vmatpush1.msra.mxu0 0.0
        %495 = vmatprep.subr.mxu0 0.0
        %496 = vmatpush1.msra.mxu0 0.0
        %497 = vmatprep.subr.mxu0 0.0
        %498 = vmatpush1.msra.mxu0 0.0
        %499 = vmatprep.subr.mxu0 0.0
        %500 = vmatpush1.msra.mxu0 0.0
        %501 = vmatprep.subr.mxu0 0.0
        %502 = vmatpush1.msra.mxu0 0.0
        %503 = vmatprep.subr.mxu0 0.0
        %504 = vmatpush1.msra.mxu0 0.0
        %505 = vmatprep.subr.mxu0 0.0
        %506 = vmatpush1.msra.mxu0 0.0
        %507 = vmatprep.subr.mxu0 0.0
        %508 = vmatpush1.msra.mxu0 0.0
        %509 = vmatprep.subr.mxu0 0.0
        %510 = vmatpush1.msra.mxu0 0.0
        %511 = vmatprep.subr.mxu0 0.0
        %512 = vmatpush1.msra.mxu0 0.0
        %513 = vmatprep.subr.mxu0 0.0
        %514 = vmatpush1.msra.mxu0 0.0
        %515 = vmatprep.mubr.f32.mxu0 0.0
        %516 = vmatmul.mubr.f32.gmra.mrb[0].mxu0 %v446
        %v517 = vpop.f32.mrb[0].mxu0
        %v518 = vadd.f32 %v437, %v517
        %v519 = vpop.f32.mrb[0].mxu0
        %520 = vmatprep.mubr.f32.mxu0 0.0
        %521 = vmatmul.mubr.f32.gmra.mrb[0].mxu0 %v449
        %v522 = vpop.f32.mrb[0].mxu0
        %v523 = vadd.f32 %v442, %v522
        %v524 = vpop.f32.mrb[0].mxu0
        %525 = vdwg.mxu0
        %v526 = vmax.f32 %v518, 0.0
        %v527 = vmax.f32 %v523, 0.0
        %v528 = vld [vmem:[%s5] sm:$0xff]
        %v529 = vld [vmem:[%s5 + $0x8] sm:$0xff]
        %530 = vrot.lane.b32.xlu0 %v526, 4
        %v531 = vpop.permute.xlu0 %530
        %532 = vrot.lane.b32.xlu0 %v527, 4
        %v533 = vpop.permute.xlu0 %532
        %v534 = vmul.f32 %v531, %v279
        %v535 = vmul.f32 %v533, %v279
        %536 = vrot.lane.b32.xlu0 %v526, 2
        %v537 = vpop.permute.xlu0 %536
        %538 = vrot.lane.b32.xlu0 %v527, 2
        %v539 = vpop.permute.xlu0 %538
        %v540 = vmul.f32 %v537, %v282
        %v541 = vmul.f32 %v539, %v282
        %v542 = vld [vmem:[%s6] sm:$0xff]
        %v543 = vld [vmem:[%s6 + $0x8] sm:$0xff]
        %545 = vset.pattern.permute.xlu0 0
        %546 = vperm.xlu0 %545, %v542
        %v547 = vpop.permute.xlu0 %546
        %550 = vset.pattern.permute.xlu0 0
        %551 = vperm.xlu0 %550, %v543
        %v552 = vpop.permute.xlu0 %551
        %v555 = vsel %vm444, %v528, 0
        %v558 = vsel %vm444, %v529, 0
        %560 = vmatprep.subr.mxu0 0.0
        %561 = vmatpush1.msra.mxu0 %v534
        %562 = vmatprep.subr.mxu0 0.0
        %563 = vmatpush1.msra.mxu0 %v535
        %564 = vmatprep.subr.mxu0 0.0
        %565 = vmatpush1.msra.mxu0 %v540
        %566 = vmatprep.subr.mxu0 0.0
        %567 = vmatpush1.msra.mxu0 %v541
        %568 = vmatprep.subr.mxu0 0.0
        %569 = vmatpush1.msra.mxu0 %v526
        %570 = vmatprep.subr.mxu0 0.0
        %571 = vmatpush1.msra.mxu0 %v527
        %572 = vmatprep.subr.mxu0 0.0
        %573 = vmatpush1.msra.mxu0 0.0
        %574 = vmatprep.subr.mxu0 0.0
        %575 = vmatpush1.msra.mxu0 0.0
        %576 = vmatprep.subr.mxu0 0.0
        %577 = vmatpush1.msra.mxu0 0.0
        %578 = vmatprep.subr.mxu0 0.0
        %579 = vmatpush1.msra.mxu0 0.0
        %580 = vmatprep.subr.mxu0 0.0
        %581 = vmatpush1.msra.mxu0 0.0
        %582 = vmatprep.subr.mxu0 0.0
        %583 = vmatpush1.msra.mxu0 0.0
        %584 = vmatprep.subr.mxu0 0.0
        %585 = vmatpush1.msra.mxu0 0.0
        %586 = vmatprep.subr.mxu0 0.0
        %587 = vmatpush1.msra.mxu0 0.0
        %588 = vmatprep.subr.mxu0 0.0
        %589 = vmatpush1.msra.mxu0 0.0
        %590 = vmatprep.subr.mxu0 0.0
        %591 = vmatpush1.msra.mxu0 0.0
        %592 = vmatprep.subr.mxu0 0.0
        %593 = vmatpush1.msra.mxu0 0.0
        %594 = vmatprep.subr.mxu0 0.0
        %595 = vmatpush1.msra.mxu0 0.0
        %596 = vmatprep.subr.mxu0 0.0
        %597 = vmatpush1.msra.mxu0 0.0
        %598 = vmatprep.subr.mxu0 0.0
        %599 = vmatpush1.msra.mxu0 0.0
        %600 = vmatprep.subr.mxu0 0.0
        %601 = vmatpush1.msra.mxu0 0.0
        %602 = vmatprep.subr.mxu0 0.0
        %603 = vmatpush1.msra.mxu0 0.0
        %604 = vmatprep.subr.mxu0 0.0
        %605 = vmatpush1.msra.mxu0 0.0
        %606 = vmatprep.subr.mxu0 0.0
        %607 = vmatpush1.msra.mxu0 0.0
        %608 = vmatprep.subr.mxu0 0.0
        %609 = vmatpush1.msra.mxu0 0.0
        %610 = vmatprep.subr.mxu0 0.0
        %611 = vmatpush1.msra.mxu0 0.0
        %612 = vmatprep.subr.mxu0 0.0
        %613 = vmatpush1.msra.mxu0 0.0
        %614 = vmatprep.subr.mxu0 0.0
        %615 = vmatpush1.msra.mxu0 0.0
        %616 = vmatprep.subr.mxu0 0.0
        %617 = vmatpush1.msra.mxu0 0.0
        %618 = vmatprep.subr.mxu0 0.0
        %619 = vmatpush1.msra.mxu0 0.0
        %620 = vmatprep.subr.mxu0 0.0
        %621 = vmatpush1.msra.mxu0 0.0
        %622 = vmatprep.subr.mxu0 0.0
        %623 = vmatpush1.msra.mxu0 0.0
        %624 = vmatprep.mubr.f32.mxu0 0.0
        %625 = vmatmul.mubr.f32.gmra.mrb[0].mxu0 %v555
        %v626 = vpop.f32.mrb[0].mxu0
        %v627 = vadd.f32 %v547, %v626
        %v628 = vpop.f32.mrb[0].mxu0
        %629 = vmatprep.mubr.f32.mxu0 0.0
        %630 = vmatmul.mubr.f32.gmra.mrb[0].mxu0 %v558
        %v631 = vpop.f32.mrb[0].mxu0
        %v632 = vadd.f32 %v552, %v631
        %v633 = vpop.f32.mrb[0].mxu0
        %634 = vdwg.mxu0
        %v635 = vadd.f32 %v408, %v627
        %v636 = vadd.f32 %v413, %v632
        %v637 = vmax.f32 %v635, 0.0
        %v638 = vmax.f32 %v636, 0.0
        %639 = vst [vmem:[%s269] sm:$0xff] %v637
        %640 = vst [vmem:[%s269 + $0x8] sm:$0xff] %v638
        %s641 = sand.u32 %s181, 1
        %s642 = scalar_lea.sflag [#allocation3], %s641
        %s643 = sand.u32 %s181, 1
        %s644 = smul.addr %s643, 16
        %s645 = scalar_lea.vmem [#allocation2], %s644
        // Predicated region
        $region49: #{tpu_custom_call.1} parent=47 // pred_check
          %p646 = pneg %p191
        $region50: #{tpu_custom_call.1} parent=47 // pred_check_branch
          %648 = sbr.rel (%p646) target = $region52
        $region51: #{tpu_custom_call.1} parent=47 // pred_region
          %s650 = ssub.s32 256, 256
          %651 = vsyncadd %s642, %s650
          %s652 = smul.addr %s21, 2
          %s653 = smul.addr %s652, 128
          %s654 = scalar_lea.hbm %s7, %s653
          %s655 = sshll.u32 %s645, 4
          %s656 = int_to_ptr.vmem [resolvable:$true] %s655
          %661 = dma.vmem_to_hbm [thread:$0]  %s656, 256, %s654, %s642, 128, 128, 8
        $region52: #{tpu_custom_call.1} parent=47 // pred_fallthru
          _
      $region48: #{tpu_custom_call.1} parent=5 // pred_fallthru
        _
      %p662 = scmp.le.s32.totalorder 2, %s16
      // Predicated region
      $region53: #{tpu_custom_call.1} parent=5 // pred_check
        %p663 = pneg %p662
      $region54: #{tpu_custom_call.1} parent=5 // pred_check_branch
        %665 = sbr.rel (%p663) target = $region56
      $region55: #{tpu_custom_call.1} parent=5 // pred_region
        %s666 = ssub.s32 %s16, 2
        // Predicated region
        $region57: #{tpu_custom_call.1} parent=55 // pred_check
          %p667 = pneg %p197
        $region58: #{tpu_custom_call.1} parent=55 // pred_check_branch
          %669 = sbr.rel (%p667) target = $region60
        $region59: #{tpu_custom_call.1} parent=55 // pred_region
          %s670 = sand.u32 %s182, 1
          %s671 = scalar_lea.sflag [#allocation3], %s670
          %s672 = sand.u32 %s182, 1
          %s673 = smul.addr %s672, 16
          %s674 = scalar_lea.vmem [#allocation2], %s673
          %675 = dma.done %s671, 256
        $region60: #{tpu_custom_call.1} parent=55 // pred_fallthru
          _
      $region56: #{tpu_custom_call.1} parent=5 // pred_fallthru
        _
    $region6: #{tpu_custom_call.1} parent=1 // loop_footer
      %s20 = sadd.s32 1, %s16
    $region7: #{tpu_custom_call.1} parent=1 // loop_footer_branch
      %15 = sbr.rel target = $region3
    $region8: #{tpu_custom_call.1} parent=1 // loop_exit
      _
    %676 = vsyncpa [#allocation3], 1
    %s677 = scalar_lea.sflag [#allocation3], 1
    %678 = vsyncpa %s677, 1

</llo_original>
